<compile_context>
chip_gen: v6e
topology: v6e:2x2x1
jax: 0.10.0
libtpu: 0.0.40
codegen_flags: <defaults>
</compile_context>

<pallas_src>
import functools
import math

import jax
import jax.numpy as jnp
import numpy as np
from jax.experimental import pallas as pl
from jax.experimental.pallas import tpu as pltpu


# ----------------------------------------------------------------------------
# Pallas kernel
# ----------------------------------------------------------------------------
def _interation2_kernel(x1_ref, x2_ref, w1_ref, w2_ref, b_ref, o_ref, *, nb):
    # x1,x2 : (nb, C, TL)   channels on sublanes, pixels on lanes
    # w1,w2 : (Cout, C)     folded (conv * BN-scale) weights, activation dtype
    # b     : (Cout, 1)     folded bias (f32)
    # o     : (nb, Cout, TL)
    w1 = w1_ref[...]
    w2 = w2_ref[...]
    b = b_ref[...]
    for i in range(nb):                      # static unroll over packed batch rows
        y = jnp.dot(w1, x1_ref[i], preferred_element_type=jnp.float32)
        y = y + jnp.dot(w2, x2_ref[i], preferred_element_type=jnp.float32)
        y = y + b                            # (Cout,1) broadcasts over lanes
        o_ref[i] = jnp.maximum(y, 0.0).astype(o_ref.dtype)


# ----------------------------------------------------------------------------
# Tile selection (generation-aware)
# ----------------------------------------------------------------------------
def _vmem_capacity_bytes():
    try:
        info = pltpu.get_tpu_info()
        cap = getattr(info, "vmem_capacity_bytes", None)
        if cap:
            return int(cap)
    except Exception:
        pass
    return 64 << 20  # conservative fallback: v7x per-TensorCore VMEM


def _choose_tiles(n, c, cout, hw, in_bytes, out_bytes, *,
                  max_cols=32768, min_steps=4):
    """Pick (nb, tl): batch rows per grid step and spatial (lane) tile.

    Sized so the double-buffered working set (2 inputs + 1 output, x2 buffers)
    stays inside a generation-aware VMEM budget, while keeping enough grid
    steps for pipelining / megacore sharding."""
    nb = min(n, max(1, 8 // max(c, 1)))       # fill >=8 sublanes when C is tiny
    # double-buffered bytes per lane column
    per_lane = 2 * nb * (2 * c * in_bytes + cout * out_bytes)
    budget = min(48 << 20, int(0.4 * _vmem_capacity_bytes()))
    cap = max(128, min(max_cols, budget // max(per_lane, 1)))
    cap = (cap // 128) * 128
    if hw <= 128 or hw <= cap:
        tl = hw                               # one full-width spatial block (legal)
    else:
        tl = cap                              # cdiv grid, masked tail tile
        t = cap
        while t >= max(128, cap // 2):        # prefer an exact divisor near cap
            if hw % t == 0:
                tl = t
                break
            t -= 128
    # keep >= min_steps grid steps so pipelining / megacore sharding survive
    batch_tiles = pl.cdiv(n, nb)
    if tl > 512 and batch_tiles * pl.cdiv(hw, tl) < min_steps:
        want_spatial = pl.cdiv(min_steps, batch_tiles)
        tl_new = pl.cdiv(pl.cdiv(hw, want_spatial), 128) * 128
        tl = max(512, min(tl, tl_new))
    return nb, tl


# ----------------------------------------------------------------------------
# Wrapper
# ----------------------------------------------------------------------------
def interation2(x1, x2, params, *, out_dtype=None, max_cols=32768):
    """Interation2 forward.  x1, x2: (N, C, H, W) NCHW.  Returns NCHW."""
    n, c, h, w = x1.shape
    hw = h * w
    cout = params["w1"].shape[0]
    out_dtype = x1.dtype if out_dtype is None else out_dtype
    in_bytes = jnp.dtype(x1.dtype).itemsize
    out_bytes = jnp.dtype(out_dtype).itemsize

    nb, tl = _choose_tiles(n, c, cout, hw, in_bytes, out_bytes,
                           max_cols=max_cols)

    x1f = x1.reshape(n, c, hw)                # free reshapes (row-major)
    x2f = x2.reshape(n, c, hw)
    w1 = params["w1"].astype(x1.dtype)        # tiny, one-time cast to act dtype
    w2 = params["w2"].astype(x1.dtype)
    b = params["b"].astype(jnp.float32)       # (Cout, 1)

    grid = (pl.cdiv(n, nb), pl.cdiv(hw, tl))

    # double-buffered working set -> scoped VMEM limit (generation-aware)
    ws = 2 * tl * nb * (2 * c * in_bytes + cout * out_bytes)
    vmem_limit = int(min(0.9 * _vmem_capacity_bytes(),
                         max(32 << 20, ws + (8 << 20))))

    cost = pl.CostEstimate(
        flops=4 * n * cout * c * hw,
        transcendentals=0,
        bytes_accessed=(2 * c * in_bytes + cout * out_bytes) * n * hw
                       + 2 * cout * c * in_bytes + 4 * cout,
    )

    kern = functools.partial(_interation2_kernel, nb=nb)

    out = pl.pallas_call(
        kern,
        out_shape=jax.ShapeDtypeStruct((n, cout, hw), out_dtype),
        grid=grid,
        in_specs=[
            pl.BlockSpec((nb, c, tl), lambda i, j: (i, 0, j)),
            pl.BlockSpec((nb, c, tl), lambda i, j: (i, 0, j)),
            pl.BlockSpec((cout, c), lambda i, j: (0, 0)),
            pl.BlockSpec((cout, c), lambda i, j: (0, 0)),
            pl.BlockSpec((cout, 1), lambda i, j: (0, 0)),
        ],
        out_specs=pl.BlockSpec((nb, cout, tl), lambda i, j: (i, 0, j)),
        compiler_params=pltpu.CompilerParams(
            dimension_semantics=("parallel", "parallel"),
            vmem_limit_bytes=vmem_limit,
        ),
        cost_estimate=cost,
    )(x1f, x2f, w1, w2, b)

    return out.reshape(n, cout, h, w)


# ----------------------------------------------------------------------------
# Parameters (PyTorch-style Conv3d init, BN folded with __init__ statistics)
# ----------------------------------------------------------------------------
def init_params(key, c):
    kw, kb = jax.random.split(key)
    fan_in = c * 2  # Cin * kT * kH * kW = C * 2 * 1 * 1
    bound = 1.0 / math.sqrt(fan_in)
    w = jax.random.uniform(kw, (c, c, 2), jnp.float32, -bound, bound)
    b = jax.random.uniform(kb, (c,), jnp.float32, -bound, bound)
    # eval-mode BN with init stats: gamma=1, beta=0, mean=0, var=1, eps=1e-5
    scale = 1.0 / math.sqrt(1.0 + 1e-5)
    return {
        "w1": w[:, :, 0] * scale,             # (Cout, Cin)  temporal tap 0
        "w2": w[:, :, 1] * scale,             # (Cout, Cin)  temporal tap 1
        "b": (b * scale).reshape(c, 1),       # (Cout, 1)
    }


# ----------------------------------------------------------------------------
# Pure-JAX reference (numerical sanity check)
# ----------------------------------------------------------------------------
def ref_forward(x1, x2, p):
    hp = jax.lax.Precision.HIGHEST
    y = (jnp.einsum("oc,nchw->nohw", p["w1"], x1, precision=hp)
         + jnp.einsum("oc,nchw->nohw", p["w2"], x2, precision=hp)
         + p["b"].reshape(1, -1, 1, 1))
    return jnp.maximum(y, 0.0)


# ----------------------------------------------------------------------------
if __name__ == "__main__":
    key = jax.random.PRNGKey(0)
    keys = jax.random.split(key, 9)

    # 1) Small shape consistent with the module: batch=2, channels=4, 16x16.
    #    nb=2 packs both batch rows (8 sublanes), single spatial tile.
    B, C, H, W = 2, 4, 16, 16
    x1 = jax.random.normal(keys[0], (B, C, H, W), jnp.float32)
    x2 = jax.random.normal(keys[1], (B, C, H, W), jnp.float32)
    params = init_params(keys[2], C)
    out = jax.block_until_ready(interation2(x1, x2, params))
    assert out.shape == (B, C, H, W)
    np.testing.assert_allclose(np.asarray(out), np.asarray(ref_forward(x1, x2, params)),
                               rtol=1e-2, atol=1e-2)

    # 2) Multi-tile grid: C=8 (nb=1), 64x64 spatial -> min-steps logic splits
    #    H*W into 2 spatial tiles, grid (2, 2).
    B2, C2, H2, W2 = 2, 8, 64, 64
    y1 = jax.random.normal(keys[3], (B2, C2, H2, W2), jnp.float32)
    y2 = jax.random.normal(keys[4], (B2, C2, H2, W2), jnp.float32)
    params2 = init_params(keys[5], C2)
    out2 = jax.block_until_ready(interation2(y1, y2, params2))
    assert out2.shape == (B2, C2, H2, W2)
    np.testing.assert_allclose(np.asarray(out2), np.asarray(ref_forward(y1, y2, params2)),
                               rtol=1e-2, atol=1e-2)

    # 3) Non-128-multiple spatial extent with a forced small tile cap:
    #    exercises the cdiv grid with a masked tail tile.
    B3, C3, H3, W3 = 2, 4, 20, 20
    z1 = jax.random.normal(keys[6], (B3, C3, H3, W3), jnp.float32)
    z2 = jax.random.normal(keys[7], (B3, C3, H3, W3), jnp.float32)
    params3 = init_params(keys[8], C3)
    out3 = jax.block_until_ready(interation2(z1, z2, params3, max_cols=128))
    assert out3.shape == (B3, C3, H3, W3)
    np.testing.assert_allclose(np.asarray(out3), np.asarray(ref_forward(z1, z2, params3)),
                               rtol=1e-2, atol=1e-2)

    print("KERNEL_OK")
</pallas_src>

<mosaic_0001>
module attributes {stable_mosaic.version = 11 : i64} {
  func.func @_interation2_kernel(%arg0: i32, %arg1: i32, %arg2: memref<2x4x256xf32, #tpu.memory_space<vmem>>, %arg3: memref<2x4x256xf32, #tpu.memory_space<vmem>>, %arg4: memref<4x4xf32, #tpu.memory_space<vmem>>, %arg5: memref<4x4xf32, #tpu.memory_space<vmem>>, %arg6: memref<4x1xf32, #tpu.memory_space<vmem>>, %arg7: memref<2x4x256xf32, #tpu.memory_space<vmem>>) attributes {dimension_semantics = [#tpu.dimension_semantics<parallel>, #tpu.dimension_semantics<parallel>], iteration_bounds = array<i64: 1, 1>, scalar_prefetch = 0 : i64, scratch_operands = 0 : i64, tpu.core_type = #tpu.core_type<tc>, window_params = [{transform_indices = @transform_0, window_bounds = array<i64: 2, 4, 256>}, {transform_indices = @transform_1, window_bounds = array<i64: 2, 4, 256>}, {pipeline_mode = #tpu.pipeline_mode<synchronous>, transform_indices = @transform_2, window_bounds = array<i64: 4, 4>}, {pipeline_mode = #tpu.pipeline_mode<synchronous>, transform_indices = @transform_3, window_bounds = array<i64: 4, 4>}, {pipeline_mode = #tpu.pipeline_mode<synchronous>, transform_indices = @transform_4, window_bounds = array<i64: 4, 1>}, {transform_indices = @transform_5, window_bounds = array<i64: 2, 4, 256>}]} {
    %c0 = arith.constant 0 : index
    %c0_0 = arith.constant 0 : index
    %0 = vector.load %arg4[%c0, %c0_0] : memref<4x4xf32, #tpu.memory_space<vmem>>, vector<4x4xf32>
    %c0_1 = arith.constant 0 : index
    %c0_2 = arith.constant 0 : index
    %1 = vector.load %arg5[%c0_1, %c0_2] : memref<4x4xf32, #tpu.memory_space<vmem>>, vector<4x4xf32>
    %c0_3 = arith.constant 0 : index
    %c0_4 = arith.constant 0 : index
    %2 = vector.load %arg6[%c0_3, %c0_4] : memref<4x1xf32, #tpu.memory_space<vmem>>, vector<4x1xf32>
    %c0_5 = arith.constant 0 : index
    %c0_6 = arith.constant 0 : index
    %c0_7 = arith.constant 0 : index
    %3 = vector.load %arg2[%c0_5, %c0_6, %c0_7] : memref<2x4x256xf32, #tpu.memory_space<vmem>>, vector<1x4x256xf32>
    %4 = vector.shape_cast %3 : vector<1x4x256xf32> to vector<4x256xf32>
    %cst = arith.constant dense<0.000000e+00> : vector<4x256xf32>
    %5 = tpu.matmul %0, %4, %cst {dimension_numbers = #tpu.dot_dimension_numbers<[1], [0], [0], [1], [0, 0, 1, 1], [], []>} : vector<4x4xf32>, vector<4x256xf32>, vector<4x256xf32> -> vector<4x256xf32>
    %c0_8 = arith.constant 0 : index
    %c0_9 = arith.constant 0 : index
    %c0_10 = arith.constant 0 : index
    %6 = vector.load %arg3[%c0_8, %c0_9, %c0_10] : memref<2x4x256xf32, #tpu.memory_space<vmem>>, vector<1x4x256xf32>
    %7 = vector.shape_cast %6 : vector<1x4x256xf32> to vector<4x256xf32>
    %cst_11 = arith.constant dense<0.000000e+00> : vector<4x256xf32>
    %8 = tpu.matmul %1, %7, %cst_11 {dimension_numbers = #tpu.dot_dimension_numbers<[1], [0], [0], [1], [0, 0, 1, 1], [], []>} : vector<4x4xf32>, vector<4x256xf32>, vector<4x256xf32> -> vector<4x256xf32>
    %9 = arith.addf %5, %8 : vector<4x256xf32>
    %10 = vector.broadcast %2 : vector<4x1xf32> to vector<4x256xf32>
    %11 = arith.addf %9, %10 : vector<4x256xf32>
    %cst_12 = arith.constant 0.000000e+00 : f32
    %12 = vector.broadcast %cst_12 : f32 to vector<4x256xf32>
    %13 = arith.maximumf %11, %12 : vector<4x256xf32>
    %c0_13 = arith.constant 0 : index
    %c0_14 = arith.constant 0 : index
    %c0_15 = arith.constant 0 : index
    %14 = vector.load %arg7[%c0_13, %c0_14, %c0_15] : memref<2x4x256xf32, #tpu.memory_space<vmem>>, vector<1x4x256xf32>
    %15 = vector.shape_cast %14 : vector<1x4x256xf32> to vector<4x256xf32>
    %16 = vector.shape_cast %13 : vector<4x256xf32> to vector<1x4x256xf32>
    tpu.vector_store %arg7[%c0_13, %c0_14, %c0_15], %16 {strides = array<i32>} : memref<2x4x256xf32, #tpu.memory_space<vmem>>, vector<1x4x256xf32>,
    %c1 = arith.constant 1 : index
    %c0_16 = arith.constant 0 : index
    %c0_17 = arith.constant 0 : index
    %17 = vector.load %arg2[%c1, %c0_16, %c0_17] : memref<2x4x256xf32, #tpu.memory_space<vmem>>, vector<1x4x256xf32>
    %18 = vector.shape_cast %17 : vector<1x4x256xf32> to vector<4x256xf32>
    %cst_18 = arith.constant dense<0.000000e+00> : vector<4x256xf32>
    %19 = tpu.matmul %0, %18, %cst_18 {dimension_numbers = #tpu.dot_dimension_numbers<[1], [0], [0], [1], [0, 0, 1, 1], [], []>} : vector<4x4xf32>, vector<4x256xf32>, vector<4x256xf32> -> vector<4x256xf32>
    %c1_19 = arith.constant 1 : index
    %c0_20 = arith.constant 0 : index
    %c0_21 = arith.constant 0 : index
    %20 = vector.load %arg3[%c1_19, %c0_20, %c0_21] : memref<2x4x256xf32, #tpu.memory_space<vmem>>, vector<1x4x256xf32>
    %21 = vector.shape_cast %20 : vector<1x4x256xf32> to vector<4x256xf32>
    %cst_22 = arith.constant dense<0.000000e+00> : vector<4x256xf32>
    %22 = tpu.matmul %1, %21, %cst_22 {dimension_numbers = #tpu.dot_dimension_numbers<[1], [0], [0], [1], [0, 0, 1, 1], [], []>} : vector<4x4xf32>, vector<4x256xf32>, vector<4x256xf32> -> vector<4x256xf32>
    %23 = arith.addf %19, %22 : vector<4x256xf32>
    %24 = vector.broadcast %2 : vector<4x1xf32> to vector<4x256xf32>
    %25 = arith.addf %23, %24 : vector<4x256xf32>
    %cst_23 = arith.constant 0.000000e+00 : f32
    %26 = vector.broadcast %cst_23 : f32 to vector<4x256xf32>
    %27 = arith.maximumf %25, %26 : vector<4x256xf32>
    %c1_24 = arith.constant 1 : index
    %c0_25 = arith.constant 0 : index
    %c0_26 = arith.constant 0 : index
    %28 = vector.load %arg7[%c1_24, %c0_25, %c0_26] : memref<2x4x256xf32, #tpu.memory_space<vmem>>, vector<1x4x256xf32>
    %29 = vector.shape_cast %28 : vector<1x4x256xf32> to vector<4x256xf32>
    %30 = vector.shape_cast %27 : vector<4x256xf32> to vector<1x4x256xf32>
    tpu.vector_store %arg7[%c1_24, %c0_25, %c0_26], %30 {strides = array<i32>} : memref<2x4x256xf32, #tpu.memory_space<vmem>>, vector<1x4x256xf32>,
    return
  }
  func.func @transform_0(%arg0: i32, %arg1: i32) -> (i32, i32, i32) {
    %c0_i32 = arith.constant 0 : i32
    %c0_i32_0 = arith.constant 0 : i32
    return %arg0, %c0_i32, %arg1 : i32, i32, i32
  }
  func.func @transform_1(%arg0: i32, %arg1: i32) -> (i32, i32, i32) {
    %c0_i32 = arith.constant 0 : i32
    %c0_i32_0 = arith.constant 0 : i32
    return %arg0, %c0_i32, %arg1 : i32, i32, i32
  }
  func.func @transform_2(%arg0: i32, %arg1: i32) -> (i32, i32) {
    %c0_i32 = arith.constant 0 : i32
    %c0_i32_0 = arith.constant 0 : i32
    %c0_i32_1 = arith.constant 0 : i32
    return %c0_i32, %c0_i32_0 : i32, i32
  }
  func.func @transform_3(%arg0: i32, %arg1: i32) -> (i32, i32) {
    %c0_i32 = arith.constant 0 : i32
    %c0_i32_0 = arith.constant 0 : i32
    %c0_i32_1 = arith.constant 0 : i32
    return %c0_i32, %c0_i32_0 : i32, i32
  }
  func.func @transform_4(%arg0: i32, %arg1: i32) -> (i32, i32) {
    %c0_i32 = arith.constant 0 : i32
    %c0_i32_0 = arith.constant 0 : i32
    %c0_i32_1 = arith.constant 0 : i32
    return %c0_i32, %c0_i32_0 : i32, i32
  }
  func.func @transform_5(%arg0: i32, %arg1: i32) -> (i32, i32, i32) {
    %c0_i32 = arith.constant 0 : i32
    %c0_i32_0 = arith.constant 0 : i32
    return %arg0, %c0_i32, %arg1 : i32, i32, i32
  }
}

</mosaic_0001>

<llo_original>
// kernel: tpu_custom_call.1
$region0: #{tpu_custom_call.1}
  #allocation0 [shape = 'u32[]', space=smem, size = 0x4, offset = 0x4, fixed_abs, tag = 'smem constant byte address 0x4 - core index']
  #allocation1 [shape = 'u32[144,128]{1,0:T(1,128)}', space=vmem, size = 0x12000, scoped, tag = 'internal scratch']
  %s0 = inlined_call_operand.hbm [shape: f32[2,4,256], index: 0, kind: input, shape index: {}]
  %s1 = inlined_call_operand.hbm [shape: f32[2,4,256], index: 1, kind: input, shape index: {}]
  %s2 = inlined_call_operand.vmem [shape: f32[4,4], index: 2, kind: input, shape index: {}]
  %s3 = inlined_call_operand.vmem [shape: f32[4,4], index: 3, kind: input, shape index: {}]
  %s4 = inlined_call_operand.vmem [shape: f32[4,1], index: 4, kind: input, shape index: {}]
  %s5 = inlined_call_operand.hbm [shape: f32[2,4,256], index: 5, kind: output, shape index: {}]
  %s6 = sld [smem:[#allocation0]]
  $region38: #{tpu_custom_call.1} parent=0
    _
  %s8 = ssub.s32 1, %s6
  %s9 = scalar_select 0, %s8, %s6
  $region1: #{tpu_custom_call.1} parent=0
    #allocation2 [shape = 'u8[8192]{0}', space=vmem, size = 0x2000, scoped, tag = 'input window, operand 0, single buffered']
    #allocation3 [shape = 's32[1]{0}', space=sflag, size = 0x4, scoped, tag = 'scoped memory for tpu_custom_call.1']
    #allocation4 [shape = 's32[1]{0}', space=sflag, size = 0x4, scoped, tag = 'scoped memory for tpu_custom_call.1']
    #allocation5 [shape = 'u8[8192]{0}', space=vmem, size = 0x2000, scoped, tag = 'input window, operand 1, single buffered']
    #allocation6 [shape = 's32[1]{0}', space=sflag, size = 0x4, scoped, tag = 'scoped memory for tpu_custom_call.1']
    #allocation7 [shape = 'u8[8192]{0}', space=vmem, size = 0x2000, scoped, tag = 'output window, operand 0, single buffered']
    %10 = vsyncpa [#allocation3], 0
    %11 = vsyncpa [#allocation6], 0
    %12 = vsyncpa [#allocation4], 0
    // Predicated region
    $region2: #{tpu_custom_call.1} parent=1 // pred_check
      _
    $region3: #{tpu_custom_call.1} parent=1 // pred_check_branch
      %14 = sbr.rel (0) target = $region5
    $region4: #{tpu_custom_call.1} parent=1 // pred_region
      %s16 = ssub.s32 256, 256
      %17 = vsyncadd [#allocation3], %s16
      %s18 = sshll.u32 [#allocation2], 4
      %s19 = int_to_ptr.vmem [resolvable:$true] %s18
      %24 = dma.hbm_to_vmem [thread:$0]  %s0, 256, %s19, [#allocation3], 128, 128, 8
    $region5: #{tpu_custom_call.1} parent=1 // pred_fallthru
      _
    // Predicated region
    $region6: #{tpu_custom_call.1} parent=1 // pred_check
      _
    $region7: #{tpu_custom_call.1} parent=1 // pred_check_branch
      %26 = sbr.rel (0) target = $region9
    $region8: #{tpu_custom_call.1} parent=1 // pred_region
      %s28 = ssub.s32 256, 256
      %29 = vsyncadd [#allocation6], %s28
      %s30 = sshll.u32 [#allocation5], 4
      %s31 = int_to_ptr.vmem [resolvable:$true] %s30
      %36 = dma.hbm_to_vmem [thread:$0]  %s1, 256, %s31, [#allocation6], 128, 128, 8
    $region9: #{tpu_custom_call.1} parent=1 // pred_fallthru
      _
    // Predicated region
    $region10: #{tpu_custom_call.1} parent=1 // pred_check
      _
    $region11: #{tpu_custom_call.1} parent=1 // pred_check_branch
      %38 = sbr.rel (0) target = $region13
    $region12: #{tpu_custom_call.1} parent=1 // pred_region
      _
    $region13: #{tpu_custom_call.1} parent=1 // pred_fallthru
      _
    // Predicated region
    $region14: #{tpu_custom_call.1} parent=1 // pred_check
      _
    $region15: #{tpu_custom_call.1} parent=1 // pred_check_branch
      %40 = sbr.rel (0) target = $region17
    $region16: #{tpu_custom_call.1} parent=1 // pred_region
      _
    $region17: #{tpu_custom_call.1} parent=1 // pred_fallthru
      _
    // Predicated region
    $region18: #{tpu_custom_call.1} parent=1 // pred_check
      _
    $region19: #{tpu_custom_call.1} parent=1 // pred_check_branch
      %42 = sbr.rel (0) target = $region21
    $region20: #{tpu_custom_call.1} parent=1 // pred_region
      _
    $region21: #{tpu_custom_call.1} parent=1 // pred_fallthru
      _
    // Predicated region
    $region22: #{tpu_custom_call.1} parent=1 // pred_check
      _
    $region23: #{tpu_custom_call.1} parent=1 // pred_check_branch
      %44 = sbr.rel (0) target = $region25
    $region24: #{tpu_custom_call.1} parent=1 // pred_region
      %45 = dma.done [#allocation3], 256
    $region25: #{tpu_custom_call.1} parent=1 // pred_fallthru
      _
    // Predicated region
    $region26: #{tpu_custom_call.1} parent=1 // pred_check
      _
    $region27: #{tpu_custom_call.1} parent=1 // pred_check_branch
      %47 = sbr.rel (0) target = $region29
    $region28: #{tpu_custom_call.1} parent=1 // pred_region
      %48 = dma.done [#allocation6], 256
    $region29: #{tpu_custom_call.1} parent=1 // pred_fallthru
      _
    %v49 = vld [vmem:[%s2] sm:$0xf]
    %v50 = vld [vmem:[%s3] sm:$0xf]
    %v51 = vld [vmem:[%s4] sm:$0xf]
    %v52 = vld [vmem:[#allocation2] sm:$0xff]
    %v53 = vld [vmem:[#allocation5] sm:$0xff]
    %v55 = vcombine.high %v53, %v53
    %vm56 = vcmask 31744
    %v58 = vsel %vm56, %v50, 0
    %vm60 = vcmask 1043456
    %v61 = vsel %vm60, %v53, 0
    %v63 = vsel %vm60, %v55, 0
    %65 = vmatprep.subr.mxu0 0.0
    %66 = vmatpush1.msra.mxu0 0.0
    %67 = vmatprep.subr.mxu0 0.0
    %68 = vmatpush1.msra.mxu0 0.0
    %69 = vmatprep.subr.mxu0 0.0
    %70 = vmatpush1.msra.mxu0 0.0
    %71 = vmatprep.subr.mxu0 0.0
    %72 = vmatpush1.msra.mxu0 0.0
    %73 = vmatprep.subr.mxu0 0.0
    %74 = vmatpush1.msra.mxu0 0.0
    %75 = vmatprep.subr.mxu0 0.0
    %76 = vmatpush1.msra.mxu0 0.0
    %77 = vmatprep.subr.mxu0 0.0
    %78 = vmatpush1.msra.mxu0 0.0
    %79 = vmatprep.subr.mxu0 0.0
    %80 = vmatpush1.msra.mxu0 0.0
    %81 = vmatprep.subr.mxu0 0.0
    %82 = vmatpush1.msra.mxu0 0.0
    %83 = vmatprep.subr.mxu0 0.0
    %84 = vmatpush1.msra.mxu0 0.0
    %85 = vmatprep.subr.mxu0 0.0
    %86 = vmatpush1.msra.mxu0 0.0
    %87 = vmatprep.subr.mxu0 0.0
    %88 = vmatpush1.msra.mxu0 0.0
    %89 = vmatprep.subr.mxu0 0.0
    %90 = vmatpush1.msra.mxu0 0.0
    %91 = vmatprep.subr.mxu0 0.0
    %92 = vmatpush1.msra.mxu0 0.0
    %93 = vmatprep.subr.mxu0 0.0
    %94 = vmatpush1.msra.mxu0 0.0
    %95 = vmatprep.subr.mxu0 %v63
    %96 = vmatpush1.msra.mxu0 %v61
    %97 = vmatprep.subr.mxu0 0.0
    %98 = vmatpush2.msra.mxu0 0.0
    %99 = vmatprep.subr.mxu0 0.0
    %100 = vmatpush2.msra.mxu0 0.0
    %101 = vmatprep.subr.mxu0 0.0
    %102 = vmatpush2.msra.mxu0 0.0
    %103 = vmatprep.subr.mxu0 0.0
    %104 = vmatpush2.msra.mxu0 0.0
    %105 = vmatprep.subr.mxu0 0.0
    %106 = vmatpush2.msra.mxu0 0.0
    %107 = vmatprep.subr.mxu0 0.0
    %108 = vmatpush2.msra.mxu0 0.0
    %109 = vmatprep.subr.mxu0 0.0
    %110 = vmatpush2.msra.mxu0 0.0
    %111 = vmatprep.subr.mxu0 0.0
    %112 = vmatpush2.msra.mxu0 0.0
    %113 = vmatprep.subr.mxu0 0.0
    %114 = vmatpush2.msra.mxu0 0.0
    %115 = vmatprep.subr.mxu0 0.0
    %116 = vmatpush2.msra.mxu0 0.0
    %117 = vmatprep.subr.mxu0 0.0
    %118 = vmatpush2.msra.mxu0 0.0
    %119 = vmatprep.subr.mxu0 0.0
    %120 = vmatpush2.msra.mxu0 0.0
    %121 = vmatprep.subr.mxu0 0.0
    %122 = vmatpush2.msra.mxu0 0.0
    %123 = vmatprep.subr.mxu0 0.0
    %124 = vmatpush2.msra.mxu0 0.0
    %125 = vmatprep.subr.mxu0 0.0
    %126 = vmatpush2.msra.mxu0 0.0
    %127 = vmatprep.subr.mxu0 0.0
    %128 = vmatpush2.msra.mxu0 0.0
    %129 = vmatprep.mubr.f32.mxu0 0.0
    %130 = vmatmul.mubr.f32.gmra.mxu0 %v58
    %v131 = vpop.f32.mrf.mxu0
    %v132 = vadd.f32 0.0, %v131
    %v133 = vpop.f32.mrf.mxu0
    %v134 = vadd.f32 0.0, %v133
    %135 = vdwg.mxu0
    %v137 = vcombine.high %v52, %v52
    %v139 = vsel %vm56, %v49, 0
    %v141 = vsel %vm60, %v52, 0
    %v143 = vsel %vm60, %v137, 0
    %145 = vmatprep.subr.mxu0 0.0
    %146 = vmatpush1.msra.mxu0 0.0
    %147 = vmatprep.subr.mxu0 0.0
    %148 = vmatpush1.msra.mxu0 0.0
    %149 = vmatprep.subr.mxu0 0.0
    %150 = vmatpush1.msra.mxu0 0.0
    %151 = vmatprep.subr.mxu0 0.0
    %152 = vmatpush1.msra.mxu0 0.0
    %153 = vmatprep.subr.mxu0 0.0
    %154 = vmatpush1.msra.mxu0 0.0
    %155 = vmatprep.subr.mxu0 0.0
    %156 = vmatpush1.msra.mxu0 0.0
    %157 = vmatprep.subr.mxu0 0.0
    %158 = vmatpush1.msra.mxu0 0.0
    %159 = vmatprep.subr.mxu0 0.0
    %160 = vmatpush1.msra.mxu0 0.0
    %161 = vmatprep.subr.mxu0 0.0
    %162 = vmatpush1.msra.mxu0 0.0
    %163 = vmatprep.subr.mxu0 0.0
    %164 = vmatpush1.msra.mxu0 0.0
    %165 = vmatprep.subr.mxu0 0.0
    %166 = vmatpush1.msra.mxu0 0.0
    %167 = vmatprep.subr.mxu0 0.0
    %168 = vmatpush1.msra.mxu0 0.0
    %169 = vmatprep.subr.mxu0 0.0
    %170 = vmatpush1.msra.mxu0 0.0
    %171 = vmatprep.subr.mxu0 0.0
    %172 = vmatpush1.msra.mxu0 0.0
    %173 = vmatprep.subr.mxu0 0.0
    %174 = vmatpush1.msra.mxu0 0.0
    %175 = vmatprep.subr.mxu0 %v143
    %176 = vmatpush1.msra.mxu0 %v141
    %177 = vmatprep.subr.mxu0 0.0
    %178 = vmatpush2.msra.mxu0 0.0
    %179 = vmatprep.subr.mxu0 0.0
    %180 = vmatpush2.msra.mxu0 0.0
    %181 = vmatprep.subr.mxu0 0.0
    %182 = vmatpush2.msra.mxu0 0.0
    %183 = vmatprep.subr.mxu0 0.0
    %184 = vmatpush2.msra.mxu0 0.0
    %185 = vmatprep.subr.mxu0 0.0
    %186 = vmatpush2.msra.mxu0 0.0
    %187 = vmatprep.subr.mxu0 0.0
    %188 = vmatpush2.msra.mxu0 0.0
    %189 = vmatprep.subr.mxu0 0.0
    %190 = vmatpush2.msra.mxu0 0.0
    %191 = vmatprep.subr.mxu0 0.0
    %192 = vmatpush2.msra.mxu0 0.0
    %193 = vmatprep.subr.mxu0 0.0
    %194 = vmatpush2.msra.mxu0 0.0
    %195 = vmatprep.subr.mxu0 0.0
    %196 = vmatpush2.msra.mxu0 0.0
    %197 = vmatprep.subr.mxu0 0.0
    %198 = vmatpush2.msra.mxu0 0.0
    %199 = vmatprep.subr.mxu0 0.0
    %200 = vmatpush2.msra.mxu0 0.0
    %201 = vmatprep.subr.mxu0 0.0
    %202 = vmatpush2.msra.mxu0 0.0
    %203 = vmatprep.subr.mxu0 0.0
    %204 = vmatpush2.msra.mxu0 0.0
    %205 = vmatprep.subr.mxu0 0.0
    %206 = vmatpush2.msra.mxu0 0.0
    %207 = vmatprep.subr.mxu0 0.0
    %208 = vmatpush2.msra.mxu0 0.0
    %209 = vmatprep.mubr.f32.mxu0 0.0
    %210 = vmatmul.mubr.f32.gmra.mxu0 %v139
    %v211 = vpop.f32.mrf.mxu0
    %v212 = vadd.f32 %v132, %v211
    %v213 = vpop.f32.mrf.mxu0
    %v214 = vadd.f32 %v134, %v213
    %215 = vdwg.mxu0
    %217 = vset.pattern.permute.xlu0 0
    %218 = vperm.xlu0 %217, %v51
    %v219 = vpop.permute.xlu0 %218
    %v221 = vadd.f32 %v212, %v219
    %v222 = vadd.f32 %v214, %v219
    %v223 = vmax.f32 %v221, 0.0
    %v224 = vmax.f32 %v222, 0.0
    %v227 = vcombine.low %v223, %v224
    %229 = vst [vmem:[#allocation7] sm:$0xff] %v227
    %s230 = scalar_lea.vmem [#allocation2], 8
    %v231 = vld [vmem:[%s230] sm:$0xff]
    %s232 = scalar_lea.vmem [#allocation5], 8
    %v233 = vld [vmem:[%s232] sm:$0xff]
    %v235 = vcombine.high %v233, %v233
    %v236 = vsel %vm60, %v233, 0
    %v238 = vsel %vm60, %v235, 0
    %240 = vmatprep.subr.mxu0 0.0
    %241 = vmatpush1.msra.mxu0 0.0
    %242 = vmatprep.subr.mxu0 0.0
    %243 = vmatpush1.msra.mxu0 0.0
    %244 = vmatprep.subr.mxu0 0.0
    %245 = vmatpush1.msra.mxu0 0.0
    %246 = vmatprep.subr.mxu0 0.0
    %247 = vmatpush1.msra.mxu0 0.0
    %248 = vmatprep.subr.mxu0 0.0
    %249 = vmatpush1.msra.mxu0 0.0
    %250 = vmatprep.subr.mxu0 0.0
    %251 = vmatpush1.msra.mxu0 0.0
    %252 = vmatprep.subr.mxu0 0.0
    %253 = vmatpush1.msra.mxu0 0.0
    %254 = vmatprep.subr.mxu0 0.0
    %255 = vmatpush1.msra.mxu0 0.0
    %256 = vmatprep.subr.mxu0 0.0
    %257 = vmatpush1.msra.mxu0 0.0
    %258 = vmatprep.subr.mxu0 0.0
    %259 = vmatpush1.msra.mxu0 0.0
    %260 = vmatprep.subr.mxu0 0.0
    %261 = vmatpush1.msra.mxu0 0.0
    %262 = vmatprep.subr.mxu0 0.0
    %263 = vmatpush1.msra.mxu0 0.0
    %264 = vmatprep.subr.mxu0 0.0
    %265 = vmatpush1.msra.mxu0 0.0
    %266 = vmatprep.subr.mxu0 0.0
    %267 = vmatpush1.msra.mxu0 0.0
    %268 = vmatprep.subr.mxu0 0.0
    %269 = vmatpush1.msra.mxu0 0.0
    %270 = vmatprep.subr.mxu0 %v238
    %271 = vmatpush1.msra.mxu0 %v236
    %272 = vmatprep.subr.mxu0 0.0
    %273 = vmatpush2.msra.mxu0 0.0
    %274 = vmatprep.subr.mxu0 0.0
    %275 = vmatpush2.msra.mxu0 0.0
    %276 = vmatprep.subr.mxu0 0.0
    %277 = vmatpush2.msra.mxu0 0.0
    %278 = vmatprep.subr.mxu0 0.0
    %279 = vmatpush2.msra.mxu0 0.0
    %280 = vmatprep.subr.mxu0 0.0
    %281 = vmatpush2.msra.mxu0 0.0
    %282 = vmatprep.subr.mxu0 0.0
    %283 = vmatpush2.msra.mxu0 0.0
    %284 = vmatprep.subr.mxu0 0.0
    %285 = vmatpush2.msra.mxu0 0.0
    %286 = vmatprep.subr.mxu0 0.0
    %287 = vmatpush2.msra.mxu0 0.0
    %288 = vmatprep.subr.mxu0 0.0
    %289 = vmatpush2.msra.mxu0 0.0
    %290 = vmatprep.subr.mxu0 0.0
    %291 = vmatpush2.msra.mxu0 0.0
    %292 = vmatprep.subr.mxu0 0.0
    %293 = vmatpush2.msra.mxu0 0.0
    %294 = vmatprep.subr.mxu0 0.0
    %295 = vmatpush2.msra.mxu0 0.0
    %296 = vmatprep.subr.mxu0 0.0
    %297 = vmatpush2.msra.mxu0 0.0
    %298 = vmatprep.subr.mxu0 0.0
    %299 = vmatpush2.msra.mxu0 0.0
    %300 = vmatprep.subr.mxu0 0.0
    %301 = vmatpush2.msra.mxu0 0.0
    %302 = vmatprep.subr.mxu0 0.0
    %303 = vmatpush2.msra.mxu0 0.0
    %304 = vmatprep.mubr.f32.mxu0 0.0
    %305 = vmatmul.mubr.f32.gmra.mxu0 %v58
    %v306 = vpop.f32.mrf.mxu0
    %v307 = vadd.f32 0.0, %v306
    %v308 = vpop.f32.mrf.mxu0
    %v309 = vadd.f32 0.0, %v308
    %310 = vdwg.mxu0
    %v312 = vcombine.high %v231, %v231
    %v313 = vsel %vm60, %v231, 0
    %v315 = vsel %vm60, %v312, 0
    %317 = vmatprep.subr.mxu0 0.0
    %318 = vmatpush1.msra.mxu0 0.0
    %319 = vmatprep.subr.mxu0 0.0
    %320 = vmatpush1.msra.mxu0 0.0
    %321 = vmatprep.subr.mxu0 0.0
    %322 = vmatpush1.msra.mxu0 0.0
    %323 = vmatprep.subr.mxu0 0.0
    %324 = vmatpush1.msra.mxu0 0.0
    %325 = vmatprep.subr.mxu0 0.0
    %326 = vmatpush1.msra.mxu0 0.0
    %327 = vmatprep.subr.mxu0 0.0
    %328 = vmatpush1.msra.mxu0 0.0
    %329 = vmatprep.subr.mxu0 0.0
    %330 = vmatpush1.msra.mxu0 0.0
    %331 = vmatprep.subr.mxu0 0.0
    %332 = vmatpush1.msra.mxu0 0.0
    %333 = vmatprep.subr.mxu0 0.0
    %334 = vmatpush1.msra.mxu0 0.0
    %335 = vmatprep.subr.mxu0 0.0
    %336 = vmatpush1.msra.mxu0 0.0
    %337 = vmatprep.subr.mxu0 0.0
    %338 = vmatpush1.msra.mxu0 0.0
    %339 = vmatprep.subr.mxu0 0.0
    %340 = vmatpush1.msra.mxu0 0.0
    %341 = vmatprep.subr.mxu0 0.0
    %342 = vmatpush1.msra.mxu0 0.0
    %343 = vmatprep.subr.mxu0 0.0
    %344 = vmatpush1.msra.mxu0 0.0
    %345 = vmatprep.subr.mxu0 0.0
    %346 = vmatpush1.msra.mxu0 0.0
    %347 = vmatprep.subr.mxu0 %v315
    %348 = vmatpush1.msra.mxu0 %v313
    %349 = vmatprep.subr.mxu0 0.0
    %350 = vmatpush2.msra.mxu0 0.0
    %351 = vmatprep.subr.mxu0 0.0
    %352 = vmatpush2.msra.mxu0 0.0
    %353 = vmatprep.subr.mxu0 0.0
    %354 = vmatpush2.msra.mxu0 0.0
    %355 = vmatprep.subr.mxu0 0.0
    %356 = vmatpush2.msra.mxu0 0.0
    %357 = vmatprep.subr.mxu0 0.0
    %358 = vmatpush2.msra.mxu0 0.0
    %359 = vmatprep.subr.mxu0 0.0
    %360 = vmatpush2.msra.mxu0 0.0
    %361 = vmatprep.subr.mxu0 0.0
    %362 = vmatpush2.msra.mxu0 0.0
    %363 = vmatprep.subr.mxu0 0.0
    %364 = vmatpush2.msra.mxu0 0.0
    %365 = vmatprep.subr.mxu0 0.0
    %366 = vmatpush2.msra.mxu0 0.0
    %367 = vmatprep.subr.mxu0 0.0
    %368 = vmatpush2.msra.mxu0 0.0
    %369 = vmatprep.subr.mxu0 0.0
    %370 = vmatpush2.msra.mxu0 0.0
    %371 = vmatprep.subr.mxu0 0.0
    %372 = vmatpush2.msra.mxu0 0.0
    %373 = vmatprep.subr.mxu0 0.0
    %374 = vmatpush2.msra.mxu0 0.0
    %375 = vmatprep.subr.mxu0 0.0
    %376 = vmatpush2.msra.mxu0 0.0
    %377 = vmatprep.subr.mxu0 0.0
    %378 = vmatpush2.msra.mxu0 0.0
    %379 = vmatprep.subr.mxu0 0.0
    %380 = vmatpush2.msra.mxu0 0.0
    %381 = vmatprep.mubr.f32.mxu0 0.0
    %382 = vmatmul.mubr.f32.gmra.mxu0 %v139
    %v383 = vpop.f32.mrf.mxu0
    %v384 = vadd.f32 %v307, %v383
    %v385 = vpop.f32.mrf.mxu0
    %v386 = vadd.f32 %v309, %v385
    %387 = vdwg.mxu0
    %v388 = vadd.f32 %v384, %v219
    %v389 = vadd.f32 %v386, %v219
    %v390 = vmax.f32 %v388, 0.0
    %v391 = vmax.f32 %v389, 0.0
    %v394 = vcombine.low %v390, %v391
    %s396 = scalar_lea.vmem [#allocation7], 8
    %397 = vst [vmem:[%s396] sm:$0xff] %v394
    // Predicated region
    $region30: #{tpu_custom_call.1} parent=1 // pred_check
      _
    $region31: #{tpu_custom_call.1} parent=1 // pred_check_branch
      %399 = sbr.rel (0) target = $region33
    $region32: #{tpu_custom_call.1} parent=1 // pred_region
      %s401 = ssub.s32 256, 256
      %402 = vsyncadd [#allocation4], %s401
      %s403 = sshll.u32 [#allocation7], 4
      %s404 = int_to_ptr.vmem [resolvable:$true] %s403
      %409 = dma.vmem_to_hbm [thread:$0]  %s404, 256, %s5, [#allocation4], 128, 128, 8
    $region33: #{tpu_custom_call.1} parent=1 // pred_fallthru
      _
    // Predicated region
    $region34: #{tpu_custom_call.1} parent=1 // pred_check
      _
    $region35: #{tpu_custom_call.1} parent=1 // pred_check_branch
      %411 = sbr.rel (0) target = $region37
    $region36: #{tpu_custom_call.1} parent=1 // pred_region
      %412 = dma.done [#allocation4], 256
    $region37: #{tpu_custom_call.1} parent=1 // pred_fallthru
      _
    %413 = vsyncpa [#allocation3], 1
    %414 = vsyncpa [#allocation6], 1
    %415 = vsyncpa [#allocation4], 1

</llo_original>
